<compile_context>
chip_gen: v6e
topology: v6e:2x2x1
jax: 0.10.0
libtpu: 0.0.40
codegen_flags: <defaults>
</compile_context>

<pallas_src>
import functools

import jax
import jax.numpy as jnp
from jax.experimental import pallas as pl
from jax.experimental.pallas import tpu as pltpu

MXU_DTYPE = jnp.bfloat16  # MXU input dtype; accumulation is always f32.


def _round_up(x, m):
    return ((x + m - 1) // m) * m


def _layer_norm(x, gamma, beta, eps):
    """torch.nn.LayerNorm over the last dim (biased variance, eps inside sqrt).

    Two-pass variance (mean of centered squares) to avoid the E[x^2]-mean^2
    cancellation issue flagged in review.
    """
    mean = jnp.mean(x, axis=-1, keepdims=True)
    xc = x - mean
    var = jnp.mean(xc * xc, axis=-1, keepdims=True)
    inv = jax.lax.rsqrt(var + eps)          # EUP slot (cheap)
    return xc * (inv * gamma) + beta


def _critic_kernel(eps, use_ln, hidden,
                   state_ref, action_ref,
                   w1s_ref, w1a_ref, w2_ref, w5_ref, w36t_ref, small_ref,
                   q_ref):
    """Fused twin-head critic. `eps`, `use_ln`, `hidden` are static Python values.

    Packed small params (f32 [R, 2H]):
      row 0: b1 || b4
      row 1: b2 || b5
      row 2: lane 0 = b3, lane H = b6
      rows 3..6 (LN only): g1||g4, beta1||beta4, g2||g5, beta2||beta5
    """
    H = hidden

    xs = state_ref[...].astype(MXU_DTYPE)
    xa = action_ref[...].astype(MXU_DTYPE)

    # --- layer 1: both heads fused 2H-wide (shared input, no structural zeros).
    #     h||g = state @ W1s + action @ W1a + (b1||b4)   (no HBM concat of sa)
    hg = (jnp.dot(xs, w1s_ref[...], preferred_element_type=jnp.float32)
          + jnp.dot(xa, w1a_ref[...], preferred_element_type=jnp.float32)
          + small_ref[0:1, :])
    h = hg[:, :H]          # lane-aligned (256) static slices: vreg subsets, no copy
    g = hg[:, H:]
    if use_ln:
        h = _layer_norm(h, small_ref[3:4, :H], small_ref[4:5, :H], eps)
        g = _layer_norm(g, small_ref[3:4, H:], small_ref[4:5, H:], eps)
    h = jnp.maximum(h, 0.0)
    g = jnp.maximum(g, 0.0)

    # --- layer 2: two real [tb,H]x[H,H] dots (no block-diagonal zero MACs).
    h = jnp.dot(h.astype(MXU_DTYPE), w2_ref[...],
                preferred_element_type=jnp.float32) + small_ref[1:2, :H]
    g = jnp.dot(g.astype(MXU_DTYPE), w5_ref[...],
                preferred_element_type=jnp.float32) + small_ref[1:2, H:]
    if use_ln:
        h = _layer_norm(h, small_ref[5:6, :H], small_ref[6:7, :H], eps)
        g = _layer_norm(g, small_ref[5:6, H:], small_ref[6:7, H:], eps)
    h = jnp.maximum(h, 0.0)
    g = jnp.maximum(g, 0.0)

    # --- output layer: lane-dense (2, tb) store.
    # q1^T[0, b] = sum_k w3[k] * h[b, k]  -> contract last dims of both operands
    # (trans-RHS matmul, same pattern as q @ k.T), result is already [1, tb].
    dn = (((1,), (1,)), ((), ()))
    q1t = jax.lax.dot_general(w36t_ref[0:1, :], h.astype(MXU_DTYPE), dn,
                              preferred_element_type=jnp.float32)   # [1, tb]
    q2t = jax.lax.dot_general(w36t_ref[1:2, :], g.astype(MXU_DTYPE), dn,
                              preferred_element_type=jnp.float32)   # [1, tb]
    q1t = q1t + small_ref[2:3, 0:1]        # + b3
    q2t = q2t + small_ref[2:3, H:H + 1]    # + b6
    q_ref[...] = jnp.concatenate([q1t, q2t], axis=0).astype(q_ref.dtype)


def init_critic_params(key, state_dim, action_dim, use_layer_norm=False, hidden=256):
    """Raw (torch-layout-equivalent) params. Linear weights stored as [in, out]."""
    in_dim = state_dim + action_dim
    dims = [
        (in_dim, hidden),  # l1
        (hidden, hidden),  # l2
        (hidden, 1),       # l3
        (in_dim, hidden),  # l4
        (hidden, hidden),  # l5
        (hidden, 1),       # l6
    ]
    params = {}
    keys = jax.random.split(key, 2 * len(dims))
    for idx, (fan_in, fan_out) in enumerate(dims, start=1):
        bound = 1.0 / jnp.sqrt(jnp.float32(fan_in))
        params[f"w{idx}"] = jax.random.uniform(
            keys[2 * (idx - 1)], (fan_in, fan_out), jnp.float32, -bound, bound)
        params[f"b{idx}"] = jax.random.uniform(
            keys[2 * (idx - 1) + 1], (1, fan_out), jnp.float32, -bound, bound)
    if use_layer_norm:
        for idx in (1, 2, 4, 5):
            params[f"g{idx}"] = jnp.ones((1, hidden), jnp.float32)
            params[f"beta{idx}"] = jnp.zeros((1, hidden), jnp.float32)
    return params


def pack_critic_params(params, state_dim, action_dim, use_layer_norm=False,
                       hidden=256, mxu_dtype=MXU_DTYPE):
    """One-time packing into the fused kernel layout (do this outside the hot loop)."""
    H = hidden

    # layer 1: W1 || W4 -> [in, 2H], split into state / action row blocks.
    w14 = jnp.concatenate([params["w1"], params["w4"]], axis=1)
    w1s = w14[:state_dim].astype(mxu_dtype)            # [S, 2H]
    w1a = w14[state_dim:].astype(mxu_dtype)            # [A, 2H]

    # layer 2: kept separate per head (no block-diagonal zero padding).
    w2 = params["w2"].astype(mxu_dtype)                # [H, H]
    w5 = params["w5"].astype(mxu_dtype)                # [H, H]

    # layer 3: transposed output weights, row 0 = w3^T, row 1 = w6^T.
    w36t = jnp.stack([params["w3"][:, 0], params["w6"][:, 0]], axis=0)  # [2, H]
    w36t = w36t.astype(mxu_dtype)

    # Small params packed into one [R, 2H] f32 array (single DMA).
    b14 = jnp.concatenate([params["b1"], params["b4"]], axis=1)
    b25 = jnp.concatenate([params["b2"], params["b5"]], axis=1)
    b36 = jnp.zeros((1, 2 * H), jnp.float32)
    b36 = b36.at[0, 0].set(params["b3"][0, 0]).at[0, H].set(params["b6"][0, 0])
    rows = [b14, b25, b36]
    if use_layer_norm:
        rows += [
            jnp.concatenate([params["g1"], params["g4"]], axis=1),
            jnp.concatenate([params["beta1"], params["beta4"]], axis=1),
            jnp.concatenate([params["g2"], params["g5"]], axis=1),
            jnp.concatenate([params["beta2"], params["beta5"]], axis=1),
        ]
    small = jnp.concatenate(rows, axis=0).astype(jnp.float32)   # [3 or 7, 2H]

    return {"w1s": w1s, "w1a": w1a, "w2": w2, "w5": w5, "w36t": w36t, "small": small}


def critic_forward(state, action, packed, use_layer_norm=False, ln_eps=1e-5, hidden=256):
    """Equivalent of Critic.forward: returns (q1, q2), each [B, 1] f32."""
    H = hidden
    B, S = state.shape
    A = action.shape[1]
    state = state.astype(jnp.float32)
    action = action.astype(jnp.float32)

    # Batch tiling:
    #   * B <= 256: one grid step (block == full padded array).
    #   * 256 < B <= 1024: exactly 2 parallel steps (v7x megacore uses both TCs),
    #     tile rounded to a multiple of 128 to keep stores unmasked.
    #   * larger B: 512-row tiles -> >=2 steps and f32 [tb,256] intermediates fit
    #     v5e's 16 MiB scoped-VMEM default.
    if B <= 256:
        tb = _round_up(max(B, 1), 8)
    elif B <= 1024:
        tb = _round_up((B + 1) // 2, 128)
    else:
        tb = 512
    B_pad = _round_up(B, tb)
    if B_pad != B:
        pad = B_pad - B
        state = jnp.pad(state, ((0, pad), (0, 0)))
        action = jnp.pad(action, ((0, pad), (0, 0)))

    grid = (B_pad // tb,)
    R = packed["small"].shape[0]

    kernel = functools.partial(_critic_kernel, float(ln_eps), bool(use_layer_norm), H)

    qT = pl.pallas_call(
        kernel,
        out_shape=jax.ShapeDtypeStruct((2, B_pad), jnp.float32),
        grid=grid,
        in_specs=[
            pl.BlockSpec((tb, S), lambda i: (i, 0)),          # state tile
            pl.BlockSpec((tb, A), lambda i: (i, 0)),          # action tile
            pl.BlockSpec((S, 2 * H), lambda i: (0, 0)),       # W1s (resident)
            pl.BlockSpec((A, 2 * H), lambda i: (0, 0)),       # W1a (resident)
            pl.BlockSpec((H, H), lambda i: (0, 0)),           # W2  (resident)
            pl.BlockSpec((H, H), lambda i: (0, 0)),           # W5  (resident)
            pl.BlockSpec((2, H), lambda i: (0, 0)),           # W3^T / W6^T
            pl.BlockSpec((R, 2 * H), lambda i: (0, 0)),       # packed small params
        ],
        out_specs=pl.BlockSpec((2, tb), lambda i: (0, i)),    # lane-dense (2, B) output
        compiler_params=pltpu.CompilerParams(
            dimension_semantics=("parallel",),
        ),
    )(state, action, packed["w1s"], packed["w1a"], packed["w2"],
      packed["w5"], packed["w36t"], packed["small"])

    q1 = qT[0, :B].reshape(B, 1)
    q2 = qT[1, :B].reshape(B, 1)
    return q1, q2


def _reference_forward(state, action, params, use_layer_norm, ln_eps):
    """Pure-JAX reference (same bf16 dot boundaries as the kernel)."""
    def mm(x, w):
        return jnp.dot(x.astype(MXU_DTYPE), w.astype(MXU_DTYPE),
                       preferred_element_type=jnp.float32)

    sa = jnp.concatenate([state, action], axis=1).astype(jnp.float32)

    def ln(x, g, b):
        m = jnp.mean(x, axis=-1, keepdims=True)
        v = jnp.mean(jnp.square(x - m), axis=-1, keepdims=True)
        return (x - m) / jnp.sqrt(v + ln_eps) * g + b

    def head(wa, ba, wb, bb, wc, bc, ga=None, bea=None, gb=None, beb=None):
        h = mm(sa, wa) + ba
        if use_layer_norm:
            h = ln(h, ga, bea)
        h = jnp.maximum(h, 0.0)
        h = mm(h, wb) + bb
        if use_layer_norm:
            h = ln(h, gb, beb)
        h = jnp.maximum(h, 0.0)
        return mm(h, wc) + bc

    if use_layer_norm:
        q1 = head(params["w1"], params["b1"], params["w2"], params["b2"],
                  params["w3"], params["b3"],
                  params["g1"], params["beta1"], params["g2"], params["beta2"])
        q2 = head(params["w4"], params["b4"], params["w5"], params["b5"],
                  params["w6"], params["b6"],
                  params["g4"], params["beta4"], params["g5"], params["beta5"])
    else:
        q1 = head(params["w1"], params["b1"], params["w2"], params["b2"],
                  params["w3"], params["b3"])
        q2 = head(params["w4"], params["b4"], params["w5"], params["b5"],
                  params["w6"], params["b6"])
    return q1, q2


if __name__ == "__main__":
    key = jax.random.PRNGKey(0)
    k_state, k_action, k_params, k_big = jax.random.split(key, 4)

    batch, state_dim, action_dim = 8, 17, 6
    state = jax.random.normal(k_state, (batch, state_dim), jnp.float32)
    action = jax.random.normal(k_action, (batch, action_dim), jnp.float32)

    ok = True
    for use_layer_norm in (False, True):
        params = init_critic_params(k_params, state_dim, action_dim,
                                    use_layer_norm=use_layer_norm)
        packed = pack_critic_params(params, state_dim, action_dim,
                                    use_layer_norm=use_layer_norm)
        q1, q2 = critic_forward(state, action, packed,
                                use_layer_norm=use_layer_norm, ln_eps=1e-5)
        q1 = jax.block_until_ready(q1)
        q2 = jax.block_until_ready(q2)

        r1, r2 = _reference_forward(state, action, params, use_layer_norm, 1e-5)
        # bf16 MXU inputs -> looser tolerance than pure f32.
        ok &= bool(jnp.allclose(q1, r1, atol=1e-2, rtol=1e-2))
        ok &= bool(jnp.allclose(q2, r2, atol=1e-2, rtol=1e-2))
        assert q1.shape == (batch, 1) and q2.shape == (batch, 1)

    # Also exercise the multi-step (2-tile) grid + lane-dense output path.
    big_b = 384
    kbs, kba = jax.random.split(k_big)
    big_state = jax.random.normal(kbs, (big_b, state_dim), jnp.float32)
    big_action = jax.random.normal(kba, (big_b, action_dim), jnp.float32)
    params = init_critic_params(k_params, state_dim, action_dim, use_layer_norm=False)
    packed = pack_critic_params(params, state_dim, action_dim, use_layer_norm=False)
    bq1, bq2 = critic_forward(big_state, big_action, packed, use_layer_norm=False)
    bq1 = jax.block_until_ready(bq1)
    bq2 = jax.block_until_ready(bq2)
    br1, br2 = _reference_forward(big_state, big_action, params, False, 1e-5)
    ok &= bool(jnp.allclose(bq1, br1, atol=1e-2, rtol=1e-2))
    ok &= bool(jnp.allclose(bq2, br2, atol=1e-2, rtol=1e-2))
    assert bq1.shape == (big_b, 1) and bq2.shape == (big_b, 1)

    if ok:
        print("KERNEL_OK")
    else:
        print("KERNEL_MISMATCH")
</pallas_src>

<mosaic_0001>
module attributes {stable_mosaic.version = 11 : i64} {
  func.func @_critic_kernel(%arg0: i32, %arg1: memref<8x17xf32, #tpu.memory_space<vmem>>, %arg2: memref<8x6xf32, #tpu.memory_space<vmem>>, %arg3: memref<17x512xbf16, #tpu.memory_space<vmem>>, %arg4: memref<6x512xbf16, #tpu.memory_space<vmem>>, %arg5: memref<256x256xbf16, #tpu.memory_space<vmem>>, %arg6: memref<256x256xbf16, #tpu.memory_space<vmem>>, %arg7: memref<2x256xbf16, #tpu.memory_space<vmem>>, %arg8: memref<3x512xf32, #tpu.memory_space<vmem>>, %arg9: memref<2x8xf32, #tpu.memory_space<vmem>>) attributes {dimension_semantics = [#tpu.dimension_semantics<parallel>], iteration_bounds = array<i64: 1>, scalar_prefetch = 0 : i64, scratch_operands = 0 : i64, tpu.core_type = #tpu.core_type<tc>, window_params = [{transform_indices = @transform_0, window_bounds = array<i64: 8, 17>}, {transform_indices = @transform_1, window_bounds = array<i64: 8, 6>}, {pipeline_mode = #tpu.pipeline_mode<synchronous>, transform_indices = @transform_2, window_bounds = array<i64: 17, 512>}, {pipeline_mode = #tpu.pipeline_mode<synchronous>, transform_indices = @transform_3, window_bounds = array<i64: 6, 512>}, {pipeline_mode = #tpu.pipeline_mode<synchronous>, transform_indices = @transform_4, window_bounds = array<i64: 256, 256>}, {pipeline_mode = #tpu.pipeline_mode<synchronous>, transform_indices = @transform_5, window_bounds = array<i64: 256, 256>}, {pipeline_mode = #tpu.pipeline_mode<synchronous>, transform_indices = @transform_6, window_bounds = array<i64: 2, 256>}, {pipeline_mode = #tpu.pipeline_mode<synchronous>, transform_indices = @transform_7, window_bounds = array<i64: 3, 512>}, {transform_indices = @transform_8, window_bounds = array<i64: 2, 8>}]} {
    %c0 = arith.constant 0 : index
    %c0_0 = arith.constant 0 : index
    %0 = vector.load %arg1[%c0, %c0_0] : memref<8x17xf32, #tpu.memory_space<vmem>>, vector<8x17xf32>
    %1 = arith.truncf %0 : vector<8x17xf32> to vector<8x17xbf16>
    %c0_1 = arith.constant 0 : index
    %c0_2 = arith.constant 0 : index
    %2 = vector.load %arg2[%c0_1, %c0_2] : memref<8x6xf32, #tpu.memory_space<vmem>>, vector<8x6xf32>
    %3 = arith.truncf %2 : vector<8x6xf32> to vector<8x6xbf16>
    %c0_3 = arith.constant 0 : index
    %c0_4 = arith.constant 0 : index
    %4 = vector.load %arg3[%c0_3, %c0_4] : memref<17x512xbf16, #tpu.memory_space<vmem>>, vector<17x512xbf16>
    %cst = arith.constant dense<0.000000e+00> : vector<8x512xf32>
    %5 = tpu.matmul %1, %4, %cst {dimension_numbers = #tpu.dot_dimension_numbers<[1], [0], [0], [1], [0, 0, 1, 1], [], []>} : vector<8x17xbf16>, vector<17x512xbf16>, vector<8x512xf32> -> vector<8x512xf32>
    %c0_5 = arith.constant 0 : index
    %c0_6 = arith.constant 0 : index
    %6 = vector.load %arg4[%c0_5, %c0_6] : memref<6x512xbf16, #tpu.memory_space<vmem>>, vector<6x512xbf16>
    %cst_7 = arith.constant dense<0.000000e+00> : vector<8x512xf32>
    %7 = tpu.matmul %3, %6, %cst_7 {dimension_numbers = #tpu.dot_dimension_numbers<[1], [0], [0], [1], [0, 0, 1, 1], [], []>} : vector<8x6xbf16>, vector<6x512xbf16>, vector<8x512xf32> -> vector<8x512xf32>
    %8 = arith.addf %5, %7 : vector<8x512xf32>
    %c0_8 = arith.constant 0 : index
    %c0_9 = arith.constant 0 : index
    %9 = vector.load %arg8[%c0_8, %c0_9] : memref<3x512xf32, #tpu.memory_space<vmem>>, vector<1x512xf32>
    %10 = vector.broadcast %9 : vector<1x512xf32> to vector<8x512xf32>
    %11 = arith.addf %8, %10 : vector<8x512xf32>
    %12 = vector.extract_strided_slice %11 {offsets = [0, 0], sizes = [8, 256], strides = [1, 1]} : vector<8x512xf32> to vector<8x256xf32>
    %13 = vector.extract_strided_slice %11 {offsets = [0, 256], sizes = [8, 256], strides = [1, 1]} : vector<8x512xf32> to vector<8x256xf32>
    %cst_10 = arith.constant 0.000000e+00 : f32
    %14 = vector.broadcast %cst_10 : f32 to vector<8x256xf32>
    %15 = arith.maximumf %12, %14 : vector<8x256xf32>
    %cst_11 = arith.constant 0.000000e+00 : f32
    %16 = vector.broadcast %cst_11 : f32 to vector<8x256xf32>
    %17 = arith.maximumf %13, %16 : vector<8x256xf32>
    %18 = arith.truncf %15 : vector<8x256xf32> to vector<8x256xbf16>
    %c0_12 = arith.constant 0 : index
    %c0_13 = arith.constant 0 : index
    %19 = vector.load %arg5[%c0_12, %c0_13] : memref<256x256xbf16, #tpu.memory_space<vmem>>, vector<256x256xbf16>
    %cst_14 = arith.constant dense<0.000000e+00> : vector<8x256xf32>
    %20 = tpu.matmul %18, %19, %cst_14 {dimension_numbers = #tpu.dot_dimension_numbers<[1], [0], [0], [1], [0, 0, 1, 1], [], []>} : vector<8x256xbf16>, vector<256x256xbf16>, vector<8x256xf32> -> vector<8x256xf32>
    %c1 = arith.constant 1 : index
    %c0_15 = arith.constant 0 : index
    %21 = vector.load %arg8[%c1, %c0_15] : memref<3x512xf32, #tpu.memory_space<vmem>>, vector<1x256xf32>
    %22 = vector.broadcast %21 : vector<1x256xf32> to vector<8x256xf32>
    %23 = arith.addf %20, %22 : vector<8x256xf32>
    %24 = arith.truncf %17 : vector<8x256xf32> to vector<8x256xbf16>
    %c0_16 = arith.constant 0 : index
    %c0_17 = arith.constant 0 : index
    %25 = vector.load %arg6[%c0_16, %c0_17] : memref<256x256xbf16, #tpu.memory_space<vmem>>, vector<256x256xbf16>
    %cst_18 = arith.constant dense<0.000000e+00> : vector<8x256xf32>
    %26 = tpu.matmul %24, %25, %cst_18 {dimension_numbers = #tpu.dot_dimension_numbers<[1], [0], [0], [1], [0, 0, 1, 1], [], []>} : vector<8x256xbf16>, vector<256x256xbf16>, vector<8x256xf32> -> vector<8x256xf32>
    %c1_19 = arith.constant 1 : index
    %c256 = arith.constant 256 : index
    %27 = vector.load %arg8[%c1_19, %c256] : memref<3x512xf32, #tpu.memory_space<vmem>>, vector<1x256xf32>
    %28 = vector.broadcast %27 : vector<1x256xf32> to vector<8x256xf32>
    %29 = arith.addf %26, %28 : vector<8x256xf32>
    %cst_20 = arith.constant 0.000000e+00 : f32
    %30 = vector.broadcast %cst_20 : f32 to vector<8x256xf32>
    %31 = arith.maximumf %23, %30 : vector<8x256xf32>
    %cst_21 = arith.constant 0.000000e+00 : f32
    %32 = vector.broadcast %cst_21 : f32 to vector<8x256xf32>
    %33 = arith.maximumf %29, %32 : vector<8x256xf32>
    %c0_22 = arith.constant 0 : index
    %c0_23 = arith.constant 0 : index
    %34 = vector.load %arg7[%c0_22, %c0_23] : memref<2x256xbf16, #tpu.memory_space<vmem>>, vector<1x256xbf16>
    %35 = arith.truncf %31 : vector<8x256xf32> to vector<8x256xbf16>
    %cst_24 = arith.constant dense<0.000000e+00> : vector<1x8xf32>
    %36 = tpu.matmul %34, %35, %cst_24 {dimension_numbers = #tpu.dot_dimension_numbers<[1], [1], [0], [0], [0, 0, 1, 0], [], []>} : vector<1x256xbf16>, vector<8x256xbf16>, vector<1x8xf32> -> vector<1x8xf32>
    %c1_25 = arith.constant 1 : index
    %c0_26 = arith.constant 0 : index
    %37 = vector.load %arg7[%c1_25, %c0_26] : memref<2x256xbf16, #tpu.memory_space<vmem>>, vector<1x256xbf16>
    %38 = arith.truncf %33 : vector<8x256xf32> to vector<8x256xbf16>
    %cst_27 = arith.constant dense<0.000000e+00> : vector<1x8xf32>
    %39 = tpu.matmul %37, %38, %cst_27 {dimension_numbers = #tpu.dot_dimension_numbers<[1], [1], [0], [0], [0, 0, 1, 0], [], []>} : vector<1x256xbf16>, vector<8x256xbf16>, vector<1x8xf32> -> vector<1x8xf32>
    %c2 = arith.constant 2 : index
    %c0_28 = arith.constant 0 : index
    %40 = vector.load %arg8[%c2, %c0_28] : memref<3x512xf32, #tpu.memory_space<vmem>>, vector<1x1xf32>
    %41 = vector.broadcast %40 : vector<1x1xf32> to vector<1x8xf32>
    %42 = arith.addf %36, %41 : vector<1x8xf32>
    %c2_29 = arith.constant 2 : index
    %c256_30 = arith.constant 256 : index
    %43 = vector.load %arg8[%c2_29, %c256_30] : memref<3x512xf32, #tpu.memory_space<vmem>>, vector<1x1xf32>
    %44 = vector.broadcast %43 : vector<1x1xf32> to vector<1x8xf32>
    %45 = arith.addf %39, %44 : vector<1x8xf32>
    %46 = tpu.concatenate %42, %45 in 0 : vector<1x8xf32>, vector<1x8xf32> -> vector<2x8xf32>
    %c0_31 = arith.constant 0 : index
    %c0_32 = arith.constant 0 : index
    %47 = vector.load %arg9[%c0_31, %c0_32] : memref<2x8xf32, #tpu.memory_space<vmem>>, vector<2x8xf32>
    tpu.vector_store %arg9[%c0_31, %c0_32], %46 {strides = array<i32>} : memref<2x8xf32, #tpu.memory_space<vmem>>, vector<2x8xf32>,
    return
  }
  func.func @transform_0(%arg0: i32) -> (i32, i32) {
    %c0_i32 = arith.constant 0 : i32
    %c0_i32_0 = arith.constant 0 : i32
    return %arg0, %c0_i32 : i32, i32
  }
  func.func @transform_1(%arg0: i32) -> (i32, i32) {
    %c0_i32 = arith.constant 0 : i32
    %c0_i32_0 = arith.constant 0 : i32
    return %arg0, %c0_i32 : i32, i32
  }
  func.func @transform_2(%arg0: i32) -> (i32, i32) {
    %c0_i32 = arith.constant 0 : i32
    %c0_i32_0 = arith.constant 0 : i32
    %c0_i32_1 = arith.constant 0 : i32
    return %c0_i32, %c0_i32_0 : i32, i32
  }
  func.func @transform_3(%arg0: i32) -> (i32, i32) {
    %c0_i32 = arith.constant 0 : i32
    %c0_i32_0 = arith.constant 0 : i32
    %c0_i32_1 = arith.constant 0 : i32
    return %c0_i32, %c0_i32_0 : i32, i32
  }
  func.func @transform_4(%arg0: i32) -> (i32, i32) {
    %c0_i32 = arith.constant 0 : i32
    %c0_i32_0 = arith.constant 0 : i32
    %c0_i32_1 = arith.constant 0 : i32
    return %c0_i32, %c0_i32_0 : i32, i32
  }
  func.func @transform_5(%arg0: i32) -> (i32, i32) {
    %c0_i32 = arith.constant 0 : i32
    %c0_i32_0 = arith.constant 0 : i32
    %c0_i32_1 = arith.constant 0 : i32
    return %c0_i32, %c0_i32_0 : i32, i32
  }
  func.func @transform_6(%arg0: i32) -> (i32, i32) {
    %c0_i32 = arith.constant 0 : i32
    %c0_i32_0 = arith.constant 0 : i32
    %c0_i32_1 = arith.constant 0 : i32
    return %c0_i32, %c0_i32_0 : i32, i32
  }
  func.func @transform_7(%arg0: i32) -> (i32, i32) {
    %c0_i32 = arith.constant 0 : i32
    %c0_i32_0 = arith.constant 0 : i32
    %c0_i32_1 = arith.constant 0 : i32
    return %c0_i32, %c0_i32_0 : i32, i32
  }
  func.func @transform_8(%arg0: i32) -> (i32, i32) {
    %c0_i32 = arith.constant 0 : i32
    %c0_i32_0 = arith.constant 0 : i32
    return %c0_i32, %arg0 : i32, i32
  }
}

</mosaic_0001>

<llo_original>
// kernel: tpu_custom_call.1
$region0: #{tpu_custom_call.1}
  #allocation0 [shape = 'u32[]', space=smem, size = 0x4, offset = 0x4, fixed_abs, tag = 'smem constant byte address 0x4 - core index']
  #allocation1 [shape = 'u32[144,128]{1,0:T(1,128)}', space=vmem, size = 0x12000, scoped, tag = 'internal scratch']
  %s0 = inlined_call_operand.hbm [shape: f32[8,17], index: 0, kind: input, shape index: {}]
  %s1 = inlined_call_operand.hbm [shape: f32[8,6], index: 1, kind: input, shape index: {}]
  %s2 = inlined_call_operand.hbm [shape: bf16[17,512], index: 2, kind: input, shape index: {}]
  %s3 = inlined_call_operand.hbm [shape: bf16[6,512], index: 3, kind: input, shape index: {}]
  %s4 = inlined_call_operand.hbm [shape: bf16[256,256], index: 4, kind: input, shape index: {}]
  %s5 = inlined_call_operand.hbm [shape: bf16[256,256], index: 5, kind: input, shape index: {}]
  %s6 = inlined_call_operand.vmem [shape: bf16[2,256], index: 6, kind: input, shape index: {}]
  %s7 = inlined_call_operand.hbm [shape: f32[3,512], index: 7, kind: input, shape index: {}]
  %s8 = inlined_call_operand.hbm [shape: f32[2,8], index: 8, kind: output, shape index: {}]
  %s9 = sld [smem:[#allocation0]]
  $region70: #{tpu_custom_call.1} parent=0
    _
  %s11 = ssub.s32 1, %s9
  %s12 = scalar_select 0, %s11, %s9
  $region1: #{tpu_custom_call.1} parent=0
    #allocation2 [shape = 'u8[4096]{0}', space=vmem, size = 0x1000, scoped, tag = 'input window, operand 0, single buffered']
    #allocation3 [shape = 's32[1]{0}', space=sflag, size = 0x4, scoped, tag = 'scoped memory for tpu_custom_call.1']
    #allocation4 [shape = 's32[1]{0}', space=sflag, size = 0x4, scoped, tag = 'scoped memory for tpu_custom_call.1']
    #allocation5 [shape = 'u8[4096]{0}', space=vmem, size = 0x1000, scoped, tag = 'input window, operand 1, single buffered']
    #allocation6 [shape = 's32[1]{0}', space=sflag, size = 0x4, scoped, tag = 'scoped memory for tpu_custom_call.1']
    #allocation7 [shape = 'u8[24576]{0}', space=vmem, size = 0x6000, scoped, tag = 'input window, operand 2, single buffered']
    #allocation8 [shape = 'u8[8192]{0}', space=vmem, size = 0x2000, scoped, tag = 'input window, operand 3, single buffered']
    #allocation9 [shape = 's32[1]{0}', space=sflag, size = 0x4, scoped, tag = 'scoped memory for tpu_custom_call.1']
    #allocation10 [shape = 'u8[131072]{0}', space=vmem, size = 0x20000, scoped, tag = 'input window, operand 4, single buffered']
    #allocation11 [shape = 'u8[131072]{0}', space=vmem, size = 0x20000, scoped, tag = 'input window, operand 5, single buffered']
    #allocation12 [shape = 's32[1]{0}', space=sflag, size = 0x4, scoped, tag = 'scoped memory for tpu_custom_call.1']
    #allocation13 [shape = 'u8[8192]{0}', space=vmem, size = 0x2000, scoped, tag = 'input window, operand 7, single buffered']
    #allocation14 [shape = 'u8[1024]{0}', space=vmem, size = 0x400, scoped, tag = 'output window, operand 0, single buffered']
    %13 = vsyncpa [#allocation3], 0
    %14 = vsyncpa [#allocation6], 0
    %15 = vsyncpa [#allocation9], 0
    %16 = vsyncpa [#allocation12], 0
    %17 = vsyncpa [#allocation4], 0
    // Predicated region
    $region2: #{tpu_custom_call.1} parent=1 // pred_check
      _
    $region3: #{tpu_custom_call.1} parent=1 // pred_check_branch
      %19 = sbr.rel (0) target = $region5
    $region4: #{tpu_custom_call.1} parent=1 // pred_region
      %s21 = ssub.s32 128, 128
      %22 = vsyncadd [#allocation3], %s21
      %s24 = sshll.u32 [#allocation2], 4
      %s25 = int_to_ptr.vmem [resolvable:$true] %s24
      %27 = dma.hbm_to_vmem [thread:$0]  %s0, 128, %s25, [#allocation3]
    $region5: #{tpu_custom_call.1} parent=1 // pred_fallthru
      _
    // Predicated region
    $region6: #{tpu_custom_call.1} parent=1 // pred_check
      _
    $region7: #{tpu_custom_call.1} parent=1 // pred_check_branch
      %29 = sbr.rel (0) target = $region9
    $region8: #{tpu_custom_call.1} parent=1 // pred_region
      %s31 = ssub.s32 128, 128
      %32 = vsyncadd [#allocation6], %s31
      %s34 = sshll.u32 [#allocation5], 4
      %s35 = int_to_ptr.vmem [resolvable:$true] %s34
      %37 = dma.hbm_to_vmem [thread:$0]  %s1, 128, %s35, [#allocation6]
    $region9: #{tpu_custom_call.1} parent=1 // pred_fallthru
      _
    // Predicated region
    $region10: #{tpu_custom_call.1} parent=1 // pred_check
      _
    $region11: #{tpu_custom_call.1} parent=1 // pred_check_branch
      %39 = sbr.rel (0) target = $region13
    $region12: #{tpu_custom_call.1} parent=1 // pred_region
      %s41 = ssub.s32 768, 768
      %42 = vsyncadd [#allocation6], %s41
      %s43 = sshll.u32 [#allocation7], 4
      %s44 = int_to_ptr.vmem [resolvable:$true] %s43
      %49 = dma.hbm_to_vmem [thread:$0]  %s2, 768, %s44, [#allocation6], 256, 256, 16
    $region13: #{tpu_custom_call.1} parent=1 // pred_fallthru
      _
    // Predicated region
    $region14: #{tpu_custom_call.1} parent=1 // pred_check
      _
    $region15: #{tpu_custom_call.1} parent=1 // pred_check_branch
      %51 = sbr.rel (0) target = $region17
    $region16: #{tpu_custom_call.1} parent=1 // pred_region
      %s53 = ssub.s32 256, 256
      %54 = vsyncadd [#allocation9], %s53
      %s56 = sshll.u32 [#allocation8], 4
      %s57 = int_to_ptr.vmem [resolvable:$true] %s56
      %59 = dma.hbm_to_vmem [thread:$0]  %s3, 256, %s57, [#allocation9]
    $region17: #{tpu_custom_call.1} parent=1 // pred_fallthru
      _
    // Predicated region
    $region18: #{tpu_custom_call.1} parent=1 // pred_check
      _
    $region19: #{tpu_custom_call.1} parent=1 // pred_check_branch
      %61 = sbr.rel (0) target = $region21
    $region20: #{tpu_custom_call.1} parent=1 // pred_region
      %s63 = ssub.s32 4096, 4096
      %64 = vsyncadd [#allocation9], %s63
      %s65 = sshll.u32 [#allocation10], 4
      %s66 = int_to_ptr.vmem [resolvable:$true] %s65
      %71 = dma.hbm_to_vmem [thread:$0]  %s4, 4096, %s66, [#allocation9], 128, 128, 8
    $region21: #{tpu_custom_call.1} parent=1 // pred_fallthru
      _
    // Predicated region
    $region22: #{tpu_custom_call.1} parent=1 // pred_check
      _
    $region23: #{tpu_custom_call.1} parent=1 // pred_check_branch
      %73 = sbr.rel (0) target = $region25
    $region24: #{tpu_custom_call.1} parent=1 // pred_region
      %s75 = ssub.s32 4096, 4096
      %76 = vsyncadd [#allocation12], %s75
      %s77 = sshll.u32 [#allocation11], 4
      %s78 = int_to_ptr.vmem [resolvable:$true] %s77
      %83 = dma.hbm_to_vmem [thread:$0]  %s5, 4096, %s78, [#allocation12], 128, 128, 8
    $region25: #{tpu_custom_call.1} parent=1 // pred_fallthru
      _
    // Predicated region
    $region26: #{tpu_custom_call.1} parent=1 // pred_check
      _
    $region27: #{tpu_custom_call.1} parent=1 // pred_check_branch
      %85 = sbr.rel (0) target = $region29
    $region28: #{tpu_custom_call.1} parent=1 // pred_region
      _
    $region29: #{tpu_custom_call.1} parent=1 // pred_fallthru
      _
    // Predicated region
    $region30: #{tpu_custom_call.1} parent=1 // pred_check
      _
    $region31: #{tpu_custom_call.1} parent=1 // pred_check_branch
      %87 = sbr.rel (0) target = $region33
    $region32: #{tpu_custom_call.1} parent=1 // pred_region
      %s89 = ssub.s32 256, 256
      %90 = vsyncadd [#allocation12], %s89
      %s92 = sshll.u32 [#allocation13], 4
      %s93 = int_to_ptr.vmem [resolvable:$true] %s92
      %95 = dma.hbm_to_vmem [thread:$0]  %s7, 256, %s93, [#allocation12]
    $region33: #{tpu_custom_call.1} parent=1 // pred_fallthru
      _
    // Predicated region
    $region34: #{tpu_custom_call.1} parent=1 // pred_check
      _
    $region35: #{tpu_custom_call.1} parent=1 // pred_check_branch
      %97 = sbr.rel (0) target = $region37
    $region36: #{tpu_custom_call.1} parent=1 // pred_region
      %98 = dma.done [#allocation3], 128
    $region37: #{tpu_custom_call.1} parent=1 // pred_fallthru
      _
    // Predicated region
    $region38: #{tpu_custom_call.1} parent=1 // pred_check
      _
    $region39: #{tpu_custom_call.1} parent=1 // pred_check_branch
      %100 = sbr.rel (0) target = $region41
    $region40: #{tpu_custom_call.1} parent=1 // pred_region
      %101 = dma.done [#allocation6], 128
    $region41: #{tpu_custom_call.1} parent=1 // pred_fallthru
      _
    // Predicated region
    $region42: #{tpu_custom_call.1} parent=1 // pred_check
      _
    $region43: #{tpu_custom_call.1} parent=1 // pred_check_branch
      %103 = sbr.rel (0) target = $region45
    $region44: #{tpu_custom_call.1} parent=1 // pred_region
      %104 = dma.done [#allocation6], 768
    $region45: #{tpu_custom_call.1} parent=1 // pred_fallthru
      _
    // Predicated region
    $region46: #{tpu_custom_call.1} parent=1 // pred_check
      _
    $region47: #{tpu_custom_call.1} parent=1 // pred_check_branch
      %106 = sbr.rel (0) target = $region49
    $region48: #{tpu_custom_call.1} parent=1 // pred_region
      %107 = dma.done [#allocation9], 256
    $region49: #{tpu_custom_call.1} parent=1 // pred_fallthru
      _
    // Predicated region
    $region50: #{tpu_custom_call.1} parent=1 // pred_check
      _
    $region51: #{tpu_custom_call.1} parent=1 // pred_check_branch
      %109 = sbr.rel (0) target = $region53
    $region52: #{tpu_custom_call.1} parent=1 // pred_region
      %110 = dma.done [#allocation9], 4096
    $region53: #{tpu_custom_call.1} parent=1 // pred_fallthru
      _
    // Predicated region
    $region54: #{tpu_custom_call.1} parent=1 // pred_check
      _
    $region55: #{tpu_custom_call.1} parent=1 // pred_check_branch
      %112 = sbr.rel (0) target = $region57
    $region56: #{tpu_custom_call.1} parent=1 // pred_region
      %113 = dma.done [#allocation12], 4096
    $region57: #{tpu_custom_call.1} parent=1 // pred_fallthru
      _
    // Predicated region
    $region58: #{tpu_custom_call.1} parent=1 // pred_check
      _
    $region59: #{tpu_custom_call.1} parent=1 // pred_check_branch
      %115 = sbr.rel (0) target = $region61
    $region60: #{tpu_custom_call.1} parent=1 // pred_region
      %116 = dma.done [#allocation12], 256
    $region61: #{tpu_custom_call.1} parent=1 // pred_fallthru
      _
    %v118 = vld [vmem:[#allocation2] sm:$0xff]
    %v119 = vpack.c.bf16 %v118, %v118
    %v120 = vld [vmem:[#allocation5] sm:$0xff]
    %v121 = vpack.c.bf16 %v120, %v120
    %v122 = vld [vmem:[#allocation7] sm:$0xff]
    %v123 = vld [vmem:[#allocation7 + $0x8] sm:$0xff]
    %v124 = vld [vmem:[#allocation7 + $0x10] sm:$0xff]
    %v125 = vld [vmem:[#allocation7 + $0x18] sm:$0xff]
    %v126 = vld [vmem:[#allocation7 + $0x20] sm:$0x11]
    %v127 = vld [vmem:[#allocation7 + $0x28] sm:$0x11]
    %v128 = vld [vmem:[#allocation8] sm:$0x77]
    %v129 = vld [vmem:[#allocation8 + $0x8] sm:$0x77]
    %v132 = vunpack.c.l.b16 %v128
    %v133 = vunpack.c.h.b16 %v128
    %v134 = vunpack.c.l.b16 %v129
    %v135 = vunpack.c.h.b16 %v129
    %v136 = vpack.c.b16 %v132, %v132
    %v137 = vpack.c.b16 %v133, %v133
    %v138 = vpack.c.b16 %v134, %v134
    %v139 = vpack.c.b16 %v135, %v135
    %vm140 = vcmask 48128
    %v142 = vsel %vm140, %v121, 0
    %vm144 = vcmask 1042432
    %v146 = vsel %vm144, %v136, 0
    %v149 = vsel %vm144, %v137, 0
    %v152 = vsel %vm144, %v138, 0
    %v155 = vsel %vm144, %v139, 0
    %157 = vmatprep.subr.bf16.mxu0 0
    %158 = vmatpush1.bf16.msra.mxu0 0
    %159 = vmatprep.subr.bf16.mxu0 0
    %160 = vmatpush1.bf16.msra.mxu0 0
    %161 = vmatprep.subr.bf16.mxu0 0
    %162 = vmatpush1.bf16.msra.mxu0 0
    %163 = vmatprep.subr.bf16.mxu0 0
    %164 = vmatpush1.bf16.msra.mxu0 0
    %165 = vmatprep.subr.bf16.mxu0 0
    %166 = vmatpush1.bf16.msra.mxu0 0
    %167 = vmatprep.subr.bf16.mxu0 0
    %168 = vmatpush1.bf16.msra.mxu0 0
    %169 = vmatprep.subr.bf16.mxu0 0
    %170 = vmatpush1.bf16.msra.mxu0 0
    %171 = vmatprep.subr.bf16.mxu0 %v149
    %172 = vmatpush1.bf16.msra.mxu0 %v146
    %173 = vmatprep.subr.bf16.mxu0 0
    %174 = vmatpush2.bf16.msra.mxu0 0
    %175 = vmatprep.subr.bf16.mxu0 0
    %176 = vmatpush2.bf16.msra.mxu0 0
    %177 = vmatprep.subr.bf16.mxu0 0
    %178 = vmatpush2.bf16.msra.mxu0 0
    %179 = vmatprep.subr.bf16.mxu0 0
    %180 = vmatpush2.bf16.msra.mxu0 0
    %181 = vmatprep.subr.bf16.mxu0 0
    %182 = vmatpush2.bf16.msra.mxu0 0
    %183 = vmatprep.subr.bf16.mxu0 0
    %184 = vmatpush2.bf16.msra.mxu0 0
    %185 = vmatprep.subr.bf16.mxu0 0
    %186 = vmatpush2.bf16.msra.mxu0 0
    %187 = vmatprep.subr.bf16.mxu0 0
    %188 = vmatpush2.bf16.msra.mxu0 0
    %189 = vmatprep.mubr.bf16.mxu0 0
    %190 = vmatmul.mubr.bf16.gmra.mxu0 %v142
    %v191 = vpop.f32.mrf.mxu0
    %v192 = vadd.f32 0.0, %v191
    %v193 = vpop.f32.mrf.mxu0
    %v194 = vadd.f32 0.0, %v193
    %v195 = vpop.f32.mrf.mxu0
    %v196 = vpop.f32.mrf.mxu0
    %197 = vdwg.mxu0
    %198 = vmatprep.subr.bf16.mxu0 0
    %199 = vmatpush1.bf16.msra.mxu0 0
    %200 = vmatprep.subr.bf16.mxu0 0
    %201 = vmatpush1.bf16.msra.mxu0 0
    %202 = vmatprep.subr.bf16.mxu0 0
    %203 = vmatpush1.bf16.msra.mxu0 0
    %204 = vmatprep.subr.bf16.mxu0 0
    %205 = vmatpush1.bf16.msra.mxu0 0
    %206 = vmatprep.subr.bf16.mxu0 0
    %207 = vmatpush1.bf16.msra.mxu0 0
    %208 = vmatprep.subr.bf16.mxu0 0
    %209 = vmatpush1.bf16.msra.mxu0 0
    %210 = vmatprep.subr.bf16.mxu0 0
    %211 = vmatpush1.bf16.msra.mxu0 0
    %212 = vmatprep.subr.bf16.mxu0 %v155
    %213 = vmatpush1.bf16.msra.mxu0 %v152
    %214 = vmatprep.subr.bf16.mxu0 0
    %215 = vmatpush2.bf16.msra.mxu0 0
    %216 = vmatprep.subr.bf16.mxu0 0
    %217 = vmatpush2.bf16.msra.mxu0 0
    %218 = vmatprep.subr.bf16.mxu0 0
    %219 = vmatpush2.bf16.msra.mxu0 0
    %220 = vmatprep.subr.bf16.mxu0 0
    %221 = vmatpush2.bf16.msra.mxu0 0
    %222 = vmatprep.subr.bf16.mxu0 0
    %223 = vmatpush2.bf16.msra.mxu0 0
    %224 = vmatprep.subr.bf16.mxu0 0
    %225 = vmatpush2.bf16.msra.mxu0 0
    %226 = vmatprep.subr.bf16.mxu0 0
    %227 = vmatpush2.bf16.msra.mxu0 0
    %228 = vmatprep.subr.bf16.mxu0 0
    %229 = vmatpush2.bf16.msra.mxu0 0
    %230 = vmatprep.mubr.bf16.mxu0 0
    %231 = vmatmul.mubr.bf16.gmra.mxu0 %v142
    %v232 = vpop.f32.mrf.mxu0
    %v233 = vadd.f32 0.0, %v232
    %v234 = vpop.f32.mrf.mxu0
    %v235 = vadd.f32 0.0, %v234
    %v236 = vpop.f32.mrf.mxu0
    %v237 = vpop.f32.mrf.mxu0
    %238 = vdwg.mxu0
    %v245 = vunpack.c.l.b16 %v122
    %v246 = vunpack.c.h.b16 %v122
    %v247 = vunpack.c.l.b16 %v123
    %v248 = vunpack.c.h.b16 %v123
    %v249 = vunpack.c.l.b16 %v124
    %v250 = vunpack.c.h.b16 %v124
    %v251 = vunpack.c.l.b16 %v125
    %v252 = vunpack.c.h.b16 %v125
    %v253 = vunpack.c.l.b16 %v126
    %v254 = vunpack.c.h.b16 %v126
    %v255 = vunpack.c.l.b16 %v127
    %v256 = vunpack.c.h.b16 %v127
    %v257 = vpack.c.b16 %v249, %v245
    %v258 = vpack.c.b16 %v250, %v246
    %v259 = vpack.c.b16 %v251, %v247
    %v260 = vpack.c.b16 %v252, %v248
    %v261 = vpack.c.b16 %v253, %v253
    %v262 = vpack.c.b16 %v254, %v254
    %v263 = vpack.c.b16 %v255, %v255
    %v264 = vpack.c.b16 %v256, %v256
    %vm269 = vcmask 138240
    %v271 = vsel %vm269, %v119, 0
    %vm273 = vcmask 1040384
    %v274 = vsel 0, 4294967295, 65535
    %v275 = vsel %vm273, %v274, 0
    %v277 = vand.u32 %v261, %v275
    %v280 = vand.u32 %v262, %v275
    %v283 = vand.u32 %v263, %v275
    %v286 = vand.u32 %v264, %v275
    %288 = vmatprep.subr.bf16.mxu0 0
    %289 = vmatpush1.bf16.msra.mxu0 0
    %290 = vmatprep.subr.bf16.mxu0 0
    %291 = vmatpush1.bf16.msra.mxu0 0
    %292 = vmatprep.subr.bf16.mxu0 0
    %293 = vmatpush1.bf16.msra.mxu0 0
    %294 = vmatprep.subr.bf16.mxu0 0
    %295 = vmatpush1.bf16.msra.mxu0 0
    %296 = vmatprep.subr.bf16.mxu0 0
    %297 = vmatpush1.bf16.msra.mxu0 0
    %298 = vmatprep.subr.bf16.mxu0 0
    %299 = vmatpush1.bf16.msra.mxu0 0
    %300 = vmatprep.subr.bf16.mxu0 %v280
    %301 = vmatpush1.bf16.msra.mxu0 %v277
    %302 = vmatprep.subr.bf16.mxu0 %v258
    %303 = vmatpush1.bf16.msra.mxu0 %v257
    %304 = vmatprep.subr.bf16.mxu0 0
    %305 = vmatpush2.bf16.msra.mxu0 0
    %306 = vmatprep.subr.bf16.mxu0 0
    %307 = vmatpush2.bf16.msra.mxu0 0
    %308 = vmatprep.subr.bf16.mxu0 0
    %309 = vmatpush2.bf16.msra.mxu0 0
    %310 = vmatprep.subr.bf16.mxu0 0
    %311 = vmatpush2.bf16.msra.mxu0 0
    %312 = vmatprep.subr.bf16.mxu0 0
    %313 = vmatpush2.bf16.msra.mxu0 0
    %314 = vmatprep.subr.bf16.mxu0 0
    %315 = vmatpush2.bf16.msra.mxu0 0
    %316 = vmatprep.subr.bf16.mxu0 0
    %317 = vmatpush2.bf16.msra.mxu0 0
    %318 = vmatprep.subr.bf16.mxu0 0
    %319 = vmatpush2.bf16.msra.mxu0 0
    %320 = vmatprep.mubr.bf16.mxu0 0
    %321 = vmatmul.mubr.bf16.gmra.mxu0 %v271
    %v322 = vpop.f32.mrf.mxu0
    %v323 = vadd.f32 %v192, %v322
    %v324 = vpop.f32.mrf.mxu0
    %v325 = vadd.f32 %v194, %v324
    %v326 = vpop.f32.mrf.mxu0
    %v327 = vpop.f32.mrf.mxu0
    %328 = vdwg.mxu0
    %329 = vmatprep.subr.bf16.mxu0 0
    %330 = vmatpush1.bf16.msra.mxu0 0
    %331 = vmatprep.subr.bf16.mxu0 0
    %332 = vmatpush1.bf16.msra.mxu0 0
    %333 = vmatprep.subr.bf16.mxu0 0
    %334 = vmatpush1.bf16.msra.mxu0 0
    %335 = vmatprep.subr.bf16.mxu0 0
    %336 = vmatpush1.bf16.msra.mxu0 0
    %337 = vmatprep.subr.bf16.mxu0 0
    %338 = vmatpush1.bf16.msra.mxu0 0
    %339 = vmatprep.subr.bf16.mxu0 0
    %340 = vmatpush1.bf16.msra.mxu0 0
    %341 = vmatprep.subr.bf16.mxu0 %v286
    %342 = vmatpush1.bf16.msra.mxu0 %v283
    %343 = vmatprep.subr.bf16.mxu0 %v260
    %344 = vmatpush1.bf16.msra.mxu0 %v259
    %345 = vmatprep.subr.bf16.mxu0 0
    %346 = vmatpush2.bf16.msra.mxu0 0
    %347 = vmatprep.subr.bf16.mxu0 0
    %348 = vmatpush2.bf16.msra.mxu0 0
    %349 = vmatprep.subr.bf16.mxu0 0
    %350 = vmatpush2.bf16.msra.mxu0 0
    %351 = vmatprep.subr.bf16.mxu0 0
    %352 = vmatpush2.bf16.msra.mxu0 0
    %353 = vmatprep.subr.bf16.mxu0 0
    %354 = vmatpush2.bf16.msra.mxu0 0
    %355 = vmatprep.subr.bf16.mxu0 0
    %356 = vmatpush2.bf16.msra.mxu0 0
    %357 = vmatprep.subr.bf16.mxu0 0
    %358 = vmatpush2.bf16.msra.mxu0 0
    %359 = vmatprep.subr.bf16.mxu0 0
    %360 = vmatpush2.bf16.msra.mxu0 0
    %361 = vmatprep.mubr.bf16.mxu0 0
    %362 = vmatmul.mubr.bf16.gmra.mxu0 %v271
    %v363 = vpop.f32.mrf.mxu0
    %v364 = vadd.f32 %v233, %v363
    %v365 = vpop.f32.mrf.mxu0
    %v366 = vadd.f32 %v235, %v365
    %v367 = vpop.f32.mrf.mxu0
    %v368 = vpop.f32.mrf.mxu0
    %369 = vdwg.mxu0
    %v370 = vld [vmem:[#allocation13] ss:$4 sm:$0xf]
    %v372 = vlaneseq
    %v373 = vshrl.u32 %v372, 7
    %v374 = vsub.s32 0, %v373
    %v375 = vrot.slane %v370, %v374
    %v376 = vlaneseq
    %v377 = vshrl.u32 %v376, 7
    %v378 = vsub.s32 1, %v377
    %v379 = vrot.slane %v370, %v378
    %v380 = vlaneseq
    %v381 = vshrl.u32 %v380, 7
    %v382 = vsub.s32 2, %v381
    %v383 = vrot.slane %v370, %v382
    %v384 = vlaneseq
    %v385 = vshrl.u32 %v384, 7
    %v386 = vsub.s32 3, %v385
    %v387 = vrot.slane %v370, %v386
    %v392 = vadd.f32 %v323, %v375
    %v393 = vadd.f32 %v325, %v379
    %v394 = vadd.f32 %v364, %v383
    %v395 = vadd.f32 %v366, %v387
    %v396 = vmax.f32 %v392, 0.0
    %v397 = vmax.f32 %v393, 0.0
    %v398 = vmax.f32 %v394, 0.0
    %v399 = vmax.f32 %v395, 0.0
    %v400 = vpack.c.bf16 %v396, %v396
    %v401 = vpack.c.bf16 %v397, %v397
    %v402 = vld [vmem:[#allocation10] sm:$0xff]
    %v403 = vld [vmem:[#allocation10 + $0x8] sm:$0xff]
    %v404 = vld [vmem:[#allocation10 + $0x10] sm:$0xff]
    %v405 = vld [vmem:[#allocation10 + $0x18] sm:$0xff]
    %v406 = vld [vmem:[#allocation10 + $0x20] sm:$0xff]
    %v407 = vld [vmem:[#allocation10 + $0x28] sm:$0xff]
    %v408 = vld [vmem:[#allocation10 + $0x30] sm:$0xff]
    %v409 = vld [vmem:[#allocation10 + $0x38] sm:$0xff]
    %v410 = vld [vmem:[#allocation10 + $0x40] sm:$0xff]
    %v411 = vld [vmem:[#allocation10 + $0x48] sm:$0xff]
    %v412 = vld [vmem:[#allocation10 + $0x50] sm:$0xff]
    %v413 = vld [vmem:[#allocation10 + $0x58] sm:$0xff]
    %v414 = vld [vmem:[#allocation10 + $0x60] sm:$0xff]
    %v415 = vld [vmem:[#allocation10 + $0x68] sm:$0xff]
    %v416 = vld [vmem:[#allocation10 + $0x70] sm:$0xff]
    %v417 = vld [vmem:[#allocation10 + $0x78] sm:$0xff]
    %v418 = vld [vmem:[#allocation10 + $0x80] sm:$0xff]
    %v419 = vld [vmem:[#allocation10 + $0x88] sm:$0xff]
    %v420 = vld [vmem:[#allocation10 + $0x90] sm:$0xff]
    %v421 = vld [vmem:[#allocation10 + $0x98] sm:$0xff]
    %v422 = vld [vmem:[#allocation10 + $0xa0] sm:$0xff]
    %v423 = vld [vmem:[#allocation10 + $0xa8] sm:$0xff]
    %v424 = vld [vmem:[#allocation10 + $0xb0] sm:$0xff]
    %v425 = vld [vmem:[#allocation10 + $0xb8] sm:$0xff]
    %v426 = vld [vmem:[#allocation10 + $0xc0] sm:$0xff]
    %v427 = vld [vmem:[#allocation10 + $0xc8] sm:$0xff]
    %v428 = vld [vmem:[#allocation10 + $0xd0] sm:$0xff]
    %v429 = vld [vmem:[#allocation10 + $0xd8] sm:$0xff]
    %v430 = vld [vmem:[#allocation10 + $0xe0] sm:$0xff]
    %v431 = vld [vmem:[#allocation10 + $0xe8] sm:$0xff]
    %v432 = vld [vmem:[#allocation10 + $0xf0] sm:$0xff]
    %v433 = vld [vmem:[#allocation10 + $0xf8] sm:$0xff]
    %s434 = scalar_lea.vmem [#allocation13], 1
    %v435 = vld [vmem:[%s434] ss:$4 sm:$0x3]
    %v437 = vlaneseq
    %v438 = vshrl.u32 %v437, 7
    %v439 = vsub.s32 0, %v438
    %v440 = vrot.slane %v435, %v439
    %v441 = vlaneseq
    %v442 = vshrl.u32 %v441, 7
    %v443 = vsub.s32 1, %v442
    %v444 = vrot.slane %v435, %v443
    %v479 = vunpack.c.l.b16 %v402
    %v480 = vunpack.c.h.b16 %v402
    %v481 = vunpack.c.l.b16 %v403
    %v482 = vunpack.c.h.b16 %v403
    %v483 = vunpack.c.l.b16 %v404
    %v484 = vunpack.c.h.b16 %v404
    %v485 = vunpack.c.l.b16 %v405
    %v486 = vunpack.c.h.b16 %v405
    %v487 = vunpack.c.l.b16 %v406
    %v488 = vunpack.c.h.b16 %v406
    %v489 = vunpack.c.l.b16 %v407
    %v490 = vunpack.c.h.b16 %v407
    %v491 = vunpack.c.l.b16 %v408
    %v492 = vunpack.c.h.b16 %v408
    %v493 = vunpack.c.l.b16 %v409
    %v494 = vunpack.c.h.b16 %v409
    %v495 = vunpack.c.l.b16 %v410
    %v496 = vunpack.c.h.b16 %v410
    %v497 = vunpack.c.l.b16 %v411
    %v498 = vunpack.c.h.b16 %v411
    %v499 = vunpack.c.l.b16 %v412
    %v500 = vunpack.c.h.b16 %v412
    %v501 = vunpack.c.l.b16 %v413
    %v502 = vunpack.c.h.b16 %v413
    %v503 = vunpack.c.l.b16 %v414
    %v504 = vunpack.c.h.b16 %v414
    %v505 = vunpack.c.l.b16 %v415
    %v506 = vunpack.c.h.b16 %v415
    %v507 = vunpack.c.l.b16 %v416
    %v508 = vunpack.c.h.b16 %v416
    %v509 = vunpack.c.l.b16 %v417
    %v510 = vunpack.c.h.b16 %v417
    %v511 = vunpack.c.l.b16 %v418
    %v512 = vunpack.c.h.b16 %v418
    %v513 = vunpack.c.l.b16 %v419
    %v514 = vunpack.c.h.b16 %v419
    %v515 = vunpack.c.l.b16 %v420
    %v516 = vunpack.c.h.b16 %v420
    %v517 = vunpack.c.l.b16 %v421
    %v518 = vunpack.c.h.b16 %v421
    %v519 = vunpack.c.l.b16 %v422
    %v520 = vunpack.c.h.b16 %v422
    %v521 = vunpack.c.l.b16 %v423
    %v522 = vunpack.c.h.b16 %v423
    %v523 = vunpack.c.l.b16 %v424
    %v524 = vunpack.c.h.b16 %v424
    %v525 = vunpack.c.l.b16 %v425
    %v526 = vunpack.c.h.b16 %v425
    %v527 = vunpack.c.l.b16 %v426
    %v528 = vunpack.c.h.b16 %v426
    %v529 = vunpack.c.l.b16 %v427
    %v530 = vunpack.c.h.b16 %v427
    %v531 = vunpack.c.l.b16 %v428
    %v532 = vunpack.c.h.b16 %v428
    %v533 = vunpack.c.l.b16 %v429
    %v534 = vunpack.c.h.b16 %v429
    %v535 = vunpack.c.l.b16 %v430
    %v536 = vunpack.c.h.b16 %v430
    %v537 = vunpack.c.l.b16 %v431
    %v538 = vunpack.c.h.b16 %v431
    %v539 = vunpack.c.l.b16 %v432
    %v540 = vunpack.c.h.b16 %v432
    %v541 = vunpack.c.l.b16 %v433
    %v542 = vunpack.c.h.b16 %v433
    %v543 = vpack.c.b16 %v481, %v479
    %v544 = vpack.c.b16 %v482, %v480
    %v545 = vpack.c.b16 %v485, %v483
    %v546 = vpack.c.b16 %v486, %v484
    %v547 = vpack.c.b16 %v489, %v487
    %v548 = vpack.c.b16 %v490, %v488
    %v549 = vpack.c.b16 %v493, %v491
    %v550 = vpack.c.b16 %v494, %v492
    %v551 = vpack.c.b16 %v497, %v495
    %v552 = vpack.c.b16 %v498, %v496
    %v553 = vpack.c.b16 %v501, %v499
    %v554 = vpack.c.b16 %v502, %v500
    %v555 = vpack.c.b16 %v505, %v503
    %v556 = vpack.c.b16 %v506, %v504
    %v557 = vpack.c.b16 %v509, %v507
    %v558 = vpack.c.b16 %v510, %v508
    %v559 = vpack.c.b16 %v513, %v511
    %v560 = vpack.c.b16 %v514, %v512
    %v561 = vpack.c.b16 %v517, %v515
    %v562 = vpack.c.b16 %v518, %v516
    %v563 = vpack.c.b16 %v521, %v519
    %v564 = vpack.c.b16 %v522, %v520
    %v565 = vpack.c.b16 %v525, %v523
    %v566 = vpack.c.b16 %v526, %v524
    %v567 = vpack.c.b16 %v529, %v527
    %v568 = vpack.c.b16 %v530, %v528
    %v569 = vpack.c.b16 %v533, %v531
    %v570 = vpack.c.b16 %v534, %v532
    %v571 = vpack.c.b16 %v537, %v535
    %v572 = vpack.c.b16 %v538, %v536
    %v573 = vpack.c.b16 %v541, %v539
    %v574 = vpack.c.b16 %v542, %v540
    %607 = vmatprep.subr.bf16.mxu0 %v558
    %608 = vmatpush1.bf16.msra.mxu0 %v557
    %609 = vmatprep.subr.bf16.mxu0 %v556
    %610 = vmatpush1.bf16.msra.mxu0 %v555
    %611 = vmatprep.subr.bf16.mxu0 %v554
    %612 = vmatpush1.bf16.msra.mxu0 %v553
    %613 = vmatprep.subr.bf16.mxu0 %v552
    %614 = vmatpush1.bf16.msra.mxu0 %v551
    %615 = vmatprep.subr.bf16.mxu0 %v550
    %616 = vmatpush1.bf16.msra.mxu0 %v549
    %617 = vmatprep.subr.bf16.mxu0 %v548
    %618 = vmatpush1.bf16.msra.mxu0 %v547
    %619 = vmatprep.subr.bf16.mxu0 %v546
    %620 = vmatpush1.bf16.msra.mxu0 %v545
    %621 = vmatprep.subr.bf16.mxu0 %v544
    %622 = vmatpush1.bf16.msra.mxu0 %v543
    %623 = vmatprep.subr.bf16.mxu0 %v574
    %624 = vmatpush2.bf16.msra.mxu0 %v573
    %625 = vmatprep.subr.bf16.mxu0 %v572
    %626 = vmatpush2.bf16.msra.mxu0 %v571
    %627 = vmatprep.subr.bf16.mxu0 %v570
    %628 = vmatpush2.bf16.msra.mxu0 %v569
    %629 = vmatprep.subr.bf16.mxu0 %v568
    %630 = vmatpush2.bf16.msra.mxu0 %v567
    %631 = vmatprep.subr.bf16.mxu0 %v566
    %632 = vmatpush2.bf16.msra.mxu0 %v565
    %633 = vmatprep.subr.bf16.mxu0 %v564
    %634 = vmatpush2.bf16.msra.mxu0 %v563
    %635 = vmatprep.subr.bf16.mxu0 %v562
    %636 = vmatpush2.bf16.msra.mxu0 %v561
    %637 = vmatprep.subr.bf16.mxu0 %v560
    %638 = vmatpush2.bf16.msra.mxu0 %v559
    %639 = vmatprep.mubr.bf16.mxu0 %v401
    %640 = vmatmul.mubr.bf16.gmra.mxu0 %v400
    %v641 = vpop.f32.mrf.mxu0
    %v642 = vadd.f32 %v440, %v641
    %v643 = vpop.f32.mrf.mxu0
    %v644 = vadd.f32 %v444, %v643
    %v645 = vpop.f32.mrf.mxu0
    %v646 = vpop.f32.mrf.mxu0
    %647 = vdwg.mxu0
    %v648 = vpack.c.bf16 %v398, %v398
    %v649 = vpack.c.bf16 %v399, %v399
    %v650 = vld [vmem:[#allocation11] sm:$0xff]
    %v651 = vld [vmem:[#allocation11 + $0x8] sm:$0xff]
    %v652 = vld [vmem:[#allocation11 + $0x10] sm:$0xff]
    %v653 = vld [vmem:[#allocation11 + $0x18] sm:$0xff]
    %v654 = vld [vmem:[#allocation11 + $0x20] sm:$0xff]
    %v655 = vld [vmem:[#allocation11 + $0x28] sm:$0xff]
    %v656 = vld [vmem:[#allocation11 + $0x30] sm:$0xff]
    %v657 = vld [vmem:[#allocation11 + $0x38] sm:$0xff]
    %v658 = vld [vmem:[#allocation11 + $0x40] sm:$0xff]
    %v659 = vld [vmem:[#allocation11 + $0x48] sm:$0xff]
    %v660 = vld [vmem:[#allocation11 + $0x50] sm:$0xff]
    %v661 = vld [vmem:[#allocation11 + $0x58] sm:$0xff]
    %v662 = vld [vmem:[#allocation11 + $0x60] sm:$0xff]
    %v663 = vld [vmem:[#allocation11 + $0x68] sm:$0xff]
    %v664 = vld [vmem:[#allocation11 + $0x70] sm:$0xff]
    %v665 = vld [vmem:[#allocation11 + $0x78] sm:$0xff]
    %v666 = vld [vmem:[#allocation11 + $0x80] sm:$0xff]
    %v667 = vld [vmem:[#allocation11 + $0x88] sm:$0xff]
    %v668 = vld [vmem:[#allocation11 + $0x90] sm:$0xff]
    %v669 = vld [vmem:[#allocation11 + $0x98] sm:$0xff]
    %v670 = vld [vmem:[#allocation11 + $0xa0] sm:$0xff]
    %v671 = vld [vmem:[#allocation11 + $0xa8] sm:$0xff]
    %v672 = vld [vmem:[#allocation11 + $0xb0] sm:$0xff]
    %v673 = vld [vmem:[#allocation11 + $0xb8] sm:$0xff]
    %v674 = vld [vmem:[#allocation11 + $0xc0] sm:$0xff]
    %v675 = vld [vmem:[#allocation11 + $0xc8] sm:$0xff]
    %v676 = vld [vmem:[#allocation11 + $0xd0] sm:$0xff]
    %v677 = vld [vmem:[#allocation11 + $0xd8] sm:$0xff]
    %v678 = vld [vmem:[#allocation11 + $0xe0] sm:$0xff]
    %v679 = vld [vmem:[#allocation11 + $0xe8] sm:$0xff]
    %v680 = vld [vmem:[#allocation11 + $0xf0] sm:$0xff]
    %v681 = vld [vmem:[#allocation11 + $0xf8] sm:$0xff]
    %s682 = scalar_lea.vmem [#allocation13], 9
    %v683 = vld [vmem:[%s682] ss:$4 sm:$0x3]
    %v685 = vlaneseq
    %v686 = vshrl.u32 %v685, 7
    %v687 = vsub.s32 0, %v686
    %v688 = vrot.slane %v683, %v687
    %v689 = vlaneseq
    %v690 = vshrl.u32 %v689, 7
    %v691 = vsub.s32 1, %v690
    %v692 = vrot.slane %v683, %v691
    %v727 = vunpack.c.l.b16 %v650
    %v728 = vunpack.c.h.b16 %v650
    %v729 = vunpack.c.l.b16 %v651
    %v730 = vunpack.c.h.b16 %v651
    %v731 = vunpack.c.l.b16 %v652
    %v732 = vunpack.c.h.b16 %v652
    %v733 = vunpack.c.l.b16 %v653
    %v734 = vunpack.c.h.b16 %v653
    %v735 = vunpack.c.l.b16 %v654
    %v736 = vunpack.c.h.b16 %v654
    %v737 = vunpack.c.l.b16 %v655
    %v738 = vunpack.c.h.b16 %v655
    %v739 = vunpack.c.l.b16 %v656
    %v740 = vunpack.c.h.b16 %v656
    %v741 = vunpack.c.l.b16 %v657
    %v742 = vunpack.c.h.b16 %v657
    %v743 = vunpack.c.l.b16 %v658
    %v744 = vunpack.c.h.b16 %v658
    %v745 = vunpack.c.l.b16 %v659
    %v746 = vunpack.c.h.b16 %v659
    %v747 = vunpack.c.l.b16 %v660
    %v748 = vunpack.c.h.b16 %v660
    %v749 = vunpack.c.l.b16 %v661
    %v750 = vunpack.c.h.b16 %v661
    %v751 = vunpack.c.l.b16 %v662
    %v752 = vunpack.c.h.b16 %v662
    %v753 = vunpack.c.l.b16 %v663
    %v754 = vunpack.c.h.b16 %v663
    %v755 = vunpack.c.l.b16 %v664
    %v756 = vunpack.c.h.b16 %v664
    %v757 = vunpack.c.l.b16 %v665
    %v758 = vunpack.c.h.b16 %v665
    %v759 = vunpack.c.l.b16 %v666
    %v760 = vunpack.c.h.b16 %v666
    %v761 = vunpack.c.l.b16 %v667
    %v762 = vunpack.c.h.b16 %v667
    %v763 = vunpack.c.l.b16 %v668
    %v764 = vunpack.c.h.b16 %v668
    %v765 = vunpack.c.l.b16 %v669
    %v766 = vunpack.c.h.b16 %v669
    %v767 = vunpack.c.l.b16 %v670
    %v768 = vunpack.c.h.b16 %v670
    %v769 = vunpack.c.l.b16 %v671
    %v770 = vunpack.c.h.b16 %v671
    %v771 = vunpack.c.l.b16 %v672
    %v772 = vunpack.c.h.b16 %v672
    %v773 = vunpack.c.l.b16 %v673
    %v774 = vunpack.c.h.b16 %v673
    %v775 = vunpack.c.l.b16 %v674
    %v776 = vunpack.c.h.b16 %v674
    %v777 = vunpack.c.l.b16 %v675
    %v778 = vunpack.c.h.b16 %v675
    %v779 = vunpack.c.l.b16 %v676
    %v780 = vunpack.c.h.b16 %v676
    %v781 = vunpack.c.l.b16 %v677
    %v782 = vunpack.c.h.b16 %v677
    %v783 = vunpack.c.l.b16 %v678
    %v784 = vunpack.c.h.b16 %v678
    %v785 = vunpack.c.l.b16 %v679
    %v786 = vunpack.c.h.b16 %v679
    %v787 = vunpack.c.l.b16 %v680
    %v788 = vunpack.c.h.b16 %v680
    %v789 = vunpack.c.l.b16 %v681
    %v790 = vunpack.c.h.b16 %v681
    %v791 = vpack.c.b16 %v729, %v727
    %v792 = vpack.c.b16 %v730, %v728
    %v793 = vpack.c.b16 %v733, %v731
    %v794 = vpack.c.b16 %v734, %v732
    %v795 = vpack.c.b16 %v737, %v735
    %v796 = vpack.c.b16 %v738, %v736
    %v797 = vpack.c.b16 %v741, %v739
    %v798 = vpack.c.b16 %v742, %v740
    %v799 = vpack.c.b16 %v745, %v743
    %v800 = vpack.c.b16 %v746, %v744
    %v801 = vpack.c.b16 %v749, %v747
    %v802 = vpack.c.b16 %v750, %v748
    %v803 = vpack.c.b16 %v753, %v751
    %v804 = vpack.c.b16 %v754, %v752
    %v805 = vpack.c.b16 %v757, %v755
    %v806 = vpack.c.b16 %v758, %v756
    %v807 = vpack.c.b16 %v761, %v759
    %v808 = vpack.c.b16 %v762, %v760
    %v809 = vpack.c.b16 %v765, %v763
    %v810 = vpack.c.b16 %v766, %v764
    %v811 = vpack.c.b16 %v769, %v767
    %v812 = vpack.c.b16 %v770, %v768
    %v813 = vpack.c.b16 %v773, %v771
    %v814 = vpack.c.b16 %v774, %v772
    %v815 = vpack.c.b16 %v777, %v775
    %v816 = vpack.c.b16 %v778, %v776
    %v817 = vpack.c.b16 %v781, %v779
    %v818 = vpack.c.b16 %v782, %v780
    %v819 = vpack.c.b16 %v785, %v783
    %v820 = vpack.c.b16 %v786, %v784
    %v821 = vpack.c.b16 %v789, %v787
    %v822 = vpack.c.b16 %v790, %v788
    %855 = vmatprep.subr.bf16.mxu0 %v806
    %856 = vmatpush1.bf16.msra.mxu0 %v805
    %857 = vmatprep.subr.bf16.mxu0 %v804
    %858 = vmatpush1.bf16.msra.mxu0 %v803
    %859 = vmatprep.subr.bf16.mxu0 %v802
    %860 = vmatpush1.bf16.msra.mxu0 %v801
    %861 = vmatprep.subr.bf16.mxu0 %v800
    %862 = vmatpush1.bf16.msra.mxu0 %v799
    %863 = vmatprep.subr.bf16.mxu0 %v798
    %864 = vmatpush1.bf16.msra.mxu0 %v797
    %865 = vmatprep.subr.bf16.mxu0 %v796
    %866 = vmatpush1.bf16.msra.mxu0 %v795
    %867 = vmatprep.subr.bf16.mxu0 %v794
    %868 = vmatpush1.bf16.msra.mxu0 %v793
    %869 = vmatprep.subr.bf16.mxu0 %v792
    %870 = vmatpush1.bf16.msra.mxu0 %v791
    %871 = vmatprep.subr.bf16.mxu0 %v822
    %872 = vmatpush2.bf16.msra.mxu0 %v821
    %873 = vmatprep.subr.bf16.mxu0 %v820
    %874 = vmatpush2.bf16.msra.mxu0 %v819
    %875 = vmatprep.subr.bf16.mxu0 %v818
    %876 = vmatpush2.bf16.msra.mxu0 %v817
    %877 = vmatprep.subr.bf16.mxu0 %v816
    %878 = vmatpush2.bf16.msra.mxu0 %v815
    %879 = vmatprep.subr.bf16.mxu0 %v814
    %880 = vmatpush2.bf16.msra.mxu0 %v813
    %881 = vmatprep.subr.bf16.mxu0 %v812
    %882 = vmatpush2.bf16.msra.mxu0 %v811
    %883 = vmatprep.subr.bf16.mxu0 %v810
    %884 = vmatpush2.bf16.msra.mxu0 %v809
    %885 = vmatprep.subr.bf16.mxu0 %v808
    %886 = vmatpush2.bf16.msra.mxu0 %v807
    %887 = vmatprep.mubr.bf16.mxu0 %v649
    %888 = vmatmul.mubr.bf16.gmra.mxu0 %v648
    %v889 = vpop.f32.mrf.mxu0
    %v890 = vadd.f32 %v688, %v889
    %v891 = vpop.f32.mrf.mxu0
    %v892 = vadd.f32 %v692, %v891
    %v893 = vpop.f32.mrf.mxu0
    %v894 = vpop.f32.mrf.mxu0
    %895 = vdwg.mxu0
    %v896 = vmax.f32 %v642, 0.0
    %v897 = vmax.f32 %v644, 0.0
    %v898 = vmax.f32 %v890, 0.0
    %v899 = vmax.f32 %v892, 0.0
    %v900 = vld [vmem:[%s6] sm:$0x3]
    %v901 = vpack.c.bf16 %v896, %v896
    %v902 = vpack.c.bf16 %v897, %v897
    %v903 = vpack.c.bf16 %v898, %v898
    %v904 = vpack.c.bf16 %v899, %v899
    %v905 = vld [vmem:[#allocation13 + $0x2] sm:$0x1]
    %907 = vset.pattern.permute.xlu0 0
    %908 = vperm.xlu0 %907, %v905
    %v909 = vpop.permute.xlu0 %908
    %v912 = vunpack.c.l.s4 839922192
    %v913 = vunpack.c.0.s8 %v912
    %v914 = vlaneseq
    %v915 = vshrl.u32 %v914, 7
    %v916 = vsub.s32 %v913, %v915
    %v917 = vrot.slane %v909, %v916
    %v920 = vunpack.c.l.s4 1966171168
    %v921 = vunpack.c.0.s8 %v920
    %v922 = vlaneseq
    %v923 = vshrl.u32 %v922, 7
    %v924 = vsub.s32 %v921, %v923
    %v925 = vrot.slane %v900, %v924
    %v926 = vcombine.high %v925, %v925
    %v928 = vunpack.c.l.s4 1966171168
    %v929 = vunpack.c.0.s8 %v928
    %v930 = vlaneseq
    %v931 = vshrl.u32 %v930, 7
    %v932 = vsub.s32 %v929, %v931
    %v933 = vrot.slane %v925, %v932
    %v935 = vunpack.c.l.s4 1966171168
    %v936 = vunpack.c.0.s8 %v935
    %v937 = vlaneseq
    %v938 = vshrl.u32 %v937, 7
    %v939 = vsub.s32 %v936, %v938
    %v940 = vrot.slane %v926, %v939
    %943 = vmatprep.subr.bf16.mxu0 0
    %944 = vmatpush1.bf16.xpose.msra.mxu0 0
    %945 = vmatprep.subr.bf16.mxu0 0
    %946 = vmatpush1.bf16.xpose.msra.mxu0 0
    %947 = vmatprep.subr.bf16.mxu0 0
    %948 = vmatpush1.bf16.xpose.msra.mxu0 0
    %949 = vmatprep.subr.bf16.mxu0 0
    %950 = vmatpush1.bf16.xpose.msra.mxu0 0
    %951 = vmatprep.subr.bf16.mxu0 0
    %952 = vmatpush1.bf16.xpose.msra.mxu0 0
    %953 = vmatprep.subr.bf16.mxu0 0
    %954 = vmatpush1.bf16.xpose.msra.mxu0 0
    %955 = vmatprep.subr.bf16.mxu0 0
    %956 = vmatpush1.bf16.xpose.msra.mxu0 0
    %957 = vmatprep.subr.bf16.mxu0 %v902
    %958 = vmatpush1.bf16.xpose.msra.mxu0 %v901
    %959 = vmatprep.subr.bf16.mxu0 0
    %960 = vmatpush2.bf16.xpose.msra.mxu0 0
    %961 = vmatprep.subr.bf16.mxu0 0
    %962 = vmatpush2.bf16.xpose.msra.mxu0 0
    %963 = vmatprep.subr.bf16.mxu0 0
    %964 = vmatpush2.bf16.xpose.msra.mxu0 0
    %965 = vmatprep.subr.bf16.mxu0 0
    %966 = vmatpush2.bf16.xpose.msra.mxu0 0
    %967 = vmatprep.subr.bf16.mxu0 0
    %968 = vmatpush2.bf16.xpose.msra.mxu0 0
    %969 = vmatprep.subr.bf16.mxu0 0
    %970 = vmatpush2.bf16.xpose.msra.mxu0 0
    %971 = vmatprep.subr.bf16.mxu0 0
    %972 = vmatpush2.bf16.xpose.msra.mxu0 0
    %973 = vmatprep.subr.bf16.mxu0 0
    %974 = vmatpush2.bf16.xpose.msra.mxu0 0
    %975 = vmatprep.mubr.bf16.mxu0 %v940
    %976 = vmatmul.mubr.bf16.gmra.mxu0 %v933
    %v977 = vpop.f32.mrf.mxu0
    %v978 = vadd.f32 %v917, %v977
    %v979 = vpop.f32.mrf.mxu0
    %v980 = vpop.f32.mrf.mxu0
    %v981 = vpop.f32.mrf.mxu0
    %982 = vdwg.mxu0
    %v983 = vld [vmem:[#allocation13 + $0xa] sm:$0x1]
    %985 = vset.pattern.permute.xlu0 0
    %986 = vperm.xlu0 %985, %v983
    %v987 = vpop.permute.xlu0 %986
    %v990 = vunpack.c.l.s4 839922192
    %v991 = vunpack.c.0.s8 %v990
    %v992 = vlaneseq
    %v993 = vshrl.u32 %v992, 7
    %v994 = vsub.s32 %v991, %v993
    %v995 = vrot.slane %v987, %v994
    %v997 = vshrl.u32 %v933, 16
    %v1000 = vshrl.u32 %v940, 16
    %1004 = vmatprep.subr.bf16.mxu0 0
    %1005 = vmatpush1.bf16.xpose.msra.mxu0 0
    %1006 = vmatprep.subr.bf16.mxu0 0
    %1007 = vmatpush1.bf16.xpose.msra.mxu0 0
    %1008 = vmatprep.subr.bf16.mxu0 0
    %1009 = vmatpush1.bf16.xpose.msra.mxu0 0
    %1010 = vmatprep.subr.bf16.mxu0 0
    %1011 = vmatpush1.bf16.xpose.msra.mxu0 0
    %1012 = vmatprep.subr.bf16.mxu0 0
    %1013 = vmatpush1.bf16.xpose.msra.mxu0 0
    %1014 = vmatprep.subr.bf16.mxu0 0
    %1015 = vmatpush1.bf16.xpose.msra.mxu0 0
    %1016 = vmatprep.subr.bf16.mxu0 0
    %1017 = vmatpush1.bf16.xpose.msra.mxu0 0
    %1018 = vmatprep.subr.bf16.mxu0 %v904
    %1019 = vmatpush1.bf16.xpose.msra.mxu0 %v903
    %1020 = vmatprep.subr.bf16.mxu0 0
    %1021 = vmatpush2.bf16.xpose.msra.mxu0 0
    %1022 = vmatprep.subr.bf16.mxu0 0
    %1023 = vmatpush2.bf16.xpose.msra.mxu0 0
    %1024 = vmatprep.subr.bf16.mxu0 0
    %1025 = vmatpush2.bf16.xpose.msra.mxu0 0
    %1026 = vmatprep.subr.bf16.mxu0 0
    %1027 = vmatpush2.bf16.xpose.msra.mxu0 0
    %1028 = vmatprep.subr.bf16.mxu0 0
    %1029 = vmatpush2.bf16.xpose.msra.mxu0 0
    %1030 = vmatprep.subr.bf16.mxu0 0
    %1031 = vmatpush2.bf16.xpose.msra.mxu0 0
    %1032 = vmatprep.subr.bf16.mxu0 0
    %1033 = vmatpush2.bf16.xpose.msra.mxu0 0
    %1034 = vmatprep.subr.bf16.mxu0 0
    %1035 = vmatpush2.bf16.xpose.msra.mxu0 0
    %1036 = vmatprep.mubr.bf16.mxu0 %v1000
    %1037 = vmatmul.mubr.bf16.gmra.mxu0 %v997
    %v1038 = vpop.f32.mrf.mxu0
    %v1039 = vadd.f32 %v995, %v1038
    %v1040 = vpop.f32.mrf.mxu0
    %v1041 = vpop.f32.mrf.mxu0
    %v1042 = vpop.f32.mrf.mxu0
    %1043 = vdwg.mxu0
    %v1045 = vrot.slane %v1039, 7
    %v1047 = vsel %vm273, %v978, %v1045
    %vm1048 = vcmask 58368
    %1049 = vst.msk [vmem:[#allocation14] sm:$0x3] %vm1048, %v1047
    // Predicated region
    $region62: #{tpu_custom_call.1} parent=1 // pred_check
      _
    $region63: #{tpu_custom_call.1} parent=1 // pred_check_branch
      %1051 = sbr.rel (0) target = $region65
    $region64: #{tpu_custom_call.1} parent=1 // pred_region
      %s1053 = ssub.s32 32, 32
      %1054 = vsyncadd [#allocation4], %s1053
      %s1056 = sshll.u32 [#allocation14], 4
      %s1057 = int_to_ptr.vmem [resolvable:$true] %s1056
      %1059 = dma.vmem_to_hbm [thread:$0]  %s1057, 32, %s8, [#allocation4]
    $region65: #{tpu_custom_call.1} parent=1 // pred_fallthru
      _
    // Predicated region
    $region66: #{tpu_custom_call.1} parent=1 // pred_check
      _
    $region67: #{tpu_custom_call.1} parent=1 // pred_check_branch
      %1061 = sbr.rel (0) target = $region69
    $region68: #{tpu_custom_call.1} parent=1 // pred_region
      %1062 = dma.done [#allocation4], 32
    $region69: #{tpu_custom_call.1} parent=1 // pred_fallthru
      _
    %1063 = vsyncpa [#allocation3], 1
    %1064 = vsyncpa [#allocation6], 1
    %1065 = vsyncpa [#allocation9], 1
    %1066 = vsyncpa [#allocation12], 1
    %1067 = vsyncpa [#allocation4], 1

</llo_original>
